<compile_context>
chip_gen: v7x
topology: tpu7x:2x2x1
jax: 0.10.0
libtpu: 0.0.40
codegen_flags: <defaults>
</compile_context>

<pallas_src>
import functools

import jax
import jax.numpy as jnp
from jax.experimental import pallas as pl
from jax.experimental.pallas import tpu as pltpu

PAD = 64  # common padded feature width (= max(D, nLayer, nLayer2) for this model)


def _elu(z):
    # ELU with alpha=1.0 (matches F.elu default); jnp.where keeps the exp branch safe.
    return jnp.where(z > 0.0, z, jnp.exp(z) - 1.0)


def mlp_bce_kernel(xy_ref, w_ref, b_ref, loss_ref, *, inv_n, d_in):
    i = pl.program_id(0)

    @pl.when(i == 0)
    def _init():
        loss_ref[...] = jnp.zeros_like(loss_ref)

    xy = xy_ref[...]                        # (TILE_N, PAD)
    y = xy[:, d_in:d_in + 1]                # (TILE_N, 1) targets
    mask = xy[:, d_in + 1:d_in + 2]         # (TILE_N, 1) 1.0 = real row, 0.0 = batch padding

    # Layers 1-3 on the MXU.  Weight-slab rows beyond each layer's true fan-in are zero,
    # so the packed y / mask / padding columns of `xy` cannot leak into the result.
    h = xy
    for l in range(3):
        h = _elu(jnp.dot(h, w_ref[l], preferred_element_type=jnp.float32) + b_ref[l])

    # Layer 4 has a single output column: VPU multiply + XLU lane-reduce instead of a
    # 1-column MXU matmul (w4 is stored transposed as row 0 of slab entry 3).
    w4_row = w_ref[3][0:1, :]               # (1, PAD); true weights in cols [0, nLayer2)
    b4 = b_ref[3][:, 0:1]                   # (1, 1)
    eta = _elu(jnp.sum(h * w4_row, axis=-1, keepdims=True) + b4)   # (TILE_N, 1)

    # Numerically stable BCEWithLogitsLoss (PyTorch formula); mean reduction realised as
    # a masked running sum divided by the true batch size at the last grid step.
    per = jnp.maximum(eta, 0.0) - eta * y + jnp.log1p(jnp.exp(-jnp.abs(eta)))
    loss_ref[...] += jnp.sum(mask * per, axis=0, keepdims=True)

    @pl.when(i == pl.num_programs(0) - 1)
    def _finalize():
        loss_ref[...] = loss_ref[...] * inv_n


def _pack_params(params):
    """Pack the 4 (W, b) pairs into one zero-padded weight slab and one bias slab."""
    (w1, b1), (w2, b2), (w3, b3), (w4, b4) = params
    d, n1 = w1.shape
    n2 = w2.shape[1]
    assert max(d, n1, n2) <= PAD and w4.shape == (n2, 1)

    w_slab = jnp.zeros((4, PAD, PAD), jnp.float32)
    w_slab = w_slab.at[0, :d, :n1].set(w1)
    w_slab = w_slab.at[1, :n1, :n2].set(w2)
    w_slab = w_slab.at[2, :n2, :n2].set(w3)
    w_slab = w_slab.at[3, 0, :n2].set(w4[:, 0])      # stored as a row for the VPU reduce

    b_slab = jnp.zeros((4, 1, PAD), jnp.float32)
    b_slab = b_slab.at[0, 0, :n1].set(b1.reshape(-1))
    b_slab = b_slab.at[1, 0, :n2].set(b2.reshape(-1))
    b_slab = b_slab.at[2, 0, :n2].set(b3.reshape(-1))
    b_slab = b_slab.at[3, 0, 0].set(b4.reshape(-1)[0])
    return w_slab, b_slab


def _pack_inputs(x, y, tile_n):
    """Pad x to PAD lanes and pack y + a valid-row mask into the zero-weight columns."""
    n, d = x.shape
    assert d + 2 <= PAD, "need two spare (zero-weight) columns for y and the row mask"
    n_pad = ((n + tile_n - 1) // tile_n) * tile_n
    xy = jnp.zeros((n_pad, PAD), jnp.float32)
    xy = xy.at[:n, :d].set(x.astype(jnp.float32))
    xy = xy.at[:n, d].set(y.reshape(-1).astype(jnp.float32))
    xy = xy.at[:n, d + 1].set(1.0)                   # valid-row mask
    return xy, n_pad


def neural_forward(y, x, params, *, tile_n=128):
    """Computes BCEWithLogitsLoss(predict(x), y) exactly like neural.forward."""
    n, d = x.shape
    w_slab, b_slab = _pack_params(params)
    xy, n_pad = _pack_inputs(x, y, tile_n)
    grid = (n_pad // tile_n,)

    kernel = functools.partial(mlp_bce_kernel, inv_n=float(1.0 / n), d_in=d)

    out = pl.pallas_call(
        kernel,
        out_shape=jax.ShapeDtypeStruct((1, 1), jnp.float32),
        grid_spec=pltpu.PrefetchScalarGridSpec(
            num_scalar_prefetch=0,
            grid=grid,
            in_specs=[
                # streamed batch tile
                pl.BlockSpec((tile_n, PAD), lambda i: (i, 0)),
                # weights + biases: constant block index -> resident in VMEM across steps
                pl.BlockSpec((4, PAD, PAD), lambda i: (0, 0, 0)),
                pl.BlockSpec((4, 1, PAD), lambda i: (0, 0, 0)),
            ],
            # (1,1) output block with a constant index: acts as the loss accumulator and
            # is written back to HBM once, after the whole grid.
            out_specs=pl.BlockSpec((1, 1), lambda i: (0, 0)),
        ),
        # The batch axis is a reduction (shared loss accumulator) -> "arbitrary".
        # A v7x dual-TC variant would need per-core partial sums before going "parallel".
        compiler_params=pltpu.CompilerParams(
            dimension_semantics=("arbitrary",),
        ),
        cost_estimate=pl.CostEstimate(
            flops=int(2 * n_pad * (3 * PAD * PAD + PAD)),
            transcendentals=int(n_pad * (3 * PAD + 3)),
            bytes_accessed=int(4 * (xy.size + w_slab.size + b_slab.size + 1)),
        ),
    )(xy, w_slab, b_slab)
    return out[0, 0]


def init_params(key, D, nLayer, nLayer2):
    """Deterministic init mimicking nn.Linear's U(-1/sqrt(fan_in), 1/sqrt(fan_in)).
    Weights stored as (in, out) so the kernel does x @ W + b."""
    def linear(key, fan_in, fan_out):
        kw, kb = jax.random.split(key)
        bound = 1.0 / jnp.sqrt(jnp.asarray(fan_in, jnp.float32))
        w = jax.random.uniform(kw, (fan_in, fan_out), jnp.float32, -bound, bound)
        b = jax.random.uniform(kb, (1, fan_out), jnp.float32, -bound, bound)
        return w, b

    k1, k2, k3, k4 = jax.random.split(key, 4)
    return (linear(k1, D, nLayer),
            linear(k2, nLayer, nLayer2),
            linear(k3, nLayer2, nLayer2),
            linear(k4, nLayer2, 1))


if __name__ == "__main__":
    # Shapes consistent with the module: neural(D=32, nLayer=64, nLayer2=32).
    # N=200 is deliberately NOT a multiple of TILE_N to exercise the masked batch padding.
    N, D, nLayer, nLayer2 = 200, 32, 64, 32
    TILE_N = 64

    key = jax.random.PRNGKey(0)
    kx, ky, kp = jax.random.split(key, 3)

    x = jax.random.normal(kx, (N, D), jnp.float32)
    # Binary targets in {0, 1}, shape (N, 1) matching eta's shape
    y = (jax.random.uniform(ky, (N, 1), jnp.float32) > 0.5).astype(jnp.float32)

    params = init_params(kp, D, nLayer, nLayer2)

    loss = neural_forward(y, x, params, tile_n=TILE_N)
    jax.block_until_ready(loss)

    # Pure-JAX reference check of the same math (unpadded)
    def ref(y, x, params):
        (w1, b1), (w2, b2), (w3, b3), (w4, b4) = params
        h = jax.nn.elu(x @ w1 + b1)
        h = jax.nn.elu(h @ w2 + b2)
        h = jax.nn.elu(h @ w3 + b3)
        eta = jax.nn.elu(h @ w4 + b4)
        per = jnp.maximum(eta, 0.0) - eta * y + jnp.log1p(jnp.exp(-jnp.abs(eta)))
        return jnp.mean(per)

    ref_loss = ref(y, x, params)
    assert jnp.allclose(loss, ref_loss, atol=2e-5, rtol=2e-5), (loss, ref_loss)

    print("KERNEL_OK")
</pallas_src>

<mosaic_0001>
module attributes {stable_mosaic.version = 11 : i64} {
  func.func @mlp_bce_kernel(%arg0: i32, %arg1: memref<64x64xf32, #tpu.memory_space<vmem>>, %arg2: memref<4x64x64xf32, #tpu.memory_space<vmem>>, %arg3: memref<4x1x64xf32, #tpu.memory_space<vmem>>, %arg4: memref<1x1xf32, #tpu.memory_space<vmem>>) attributes {dimension_semantics = [#tpu.dimension_semantics<arbitrary>], iteration_bounds = array<i64: 4>, scalar_prefetch = 0 : i64, scratch_operands = 0 : i64, tpu.core_type = #tpu.core_type<tc>, window_params = [{transform_indices = @transform_0, window_bounds = array<i64: 64, 64>}, {pipeline_mode = #tpu.pipeline_mode<synchronous>, transform_indices = @transform_1, window_bounds = array<i64: 4, 64, 64>}, {pipeline_mode = #tpu.pipeline_mode<synchronous>, transform_indices = @transform_2, window_bounds = array<i64: 4, 1, 64>}, {pipeline_mode = #tpu.pipeline_mode<synchronous>, transform_indices = @transform_3, window_bounds = array<i64: 1, 1>}]} {
    %c0_i32 = arith.constant 0 : i32
    %0 = arith.cmpi eq, %arg0, %c0_i32 : i32
    %1 = arith.extui %0 : i1 to i32
    %c0_i32_0 = arith.constant 0 : i32
    %2 = arith.cmpi ne, %1, %c0_i32_0 : i32
    scf.if %2 {
      %cst_42 = arith.constant 0.000000e+00 : f32
      %82 = vector.broadcast %cst_42 : f32 to vector<1x1xf32>
      %c0_43 = arith.constant 0 : index
      %c0_44 = arith.constant 0 : index
      %83 = vector.load %arg4[%c0_43, %c0_44] : memref<1x1xf32, #tpu.memory_space<vmem>>, vector<1x1xf32>
      tpu.vector_store %arg4[%c0_43, %c0_44], %82 {strides = array<i32>} : memref<1x1xf32, #tpu.memory_space<vmem>>, vector<1x1xf32>,
    } else {
    }
    %c0 = arith.constant 0 : index
    %c0_1 = arith.constant 0 : index
    %3 = vector.load %arg1[%c0, %c0_1] : memref<64x64xf32, #tpu.memory_space<vmem>>, vector<64x64xf32>
    %4 = vector.extract_strided_slice %3 {offsets = [0, 32], sizes = [64, 1], strides = [1, 1]} : vector<64x64xf32> to vector<64x1xf32>
    %5 = vector.extract_strided_slice %3 {offsets = [0, 33], sizes = [64, 1], strides = [1, 1]} : vector<64x64xf32> to vector<64x1xf32>
    %c0_2 = arith.constant 0 : index
    %c0_3 = arith.constant 0 : index
    %c0_4 = arith.constant 0 : index
    %6 = vector.load %arg2[%c0_2, %c0_3, %c0_4] : memref<4x64x64xf32, #tpu.memory_space<vmem>>, vector<1x64x64xf32>
    %7 = vector.shape_cast %6 : vector<1x64x64xf32> to vector<64x64xf32>
    %cst = arith.constant dense<0.000000e+00> : vector<64x64xf32>
    %8 = tpu.matmul %3, %7, %cst {dimension_numbers = #tpu.dot_dimension_numbers<[1], [0], [0], [1], [0, 0, 1, 1], [], []>} : vector<64x64xf32>, vector<64x64xf32>, vector<64x64xf32> -> vector<64x64xf32>
    %c0_5 = arith.constant 0 : index
    %c0_6 = arith.constant 0 : index
    %c0_7 = arith.constant 0 : index
    %9 = vector.load %arg3[%c0_5, %c0_6, %c0_7] : memref<4x1x64xf32, #tpu.memory_space<vmem>>, vector<1x1x64xf32>
    %10 = vector.shape_cast %9 : vector<1x1x64xf32> to vector<1x64xf32>
    %11 = vector.broadcast %10 : vector<1x64xf32> to vector<64x64xf32>
    %12 = arith.addf %8, %11 : vector<64x64xf32>
    %cst_8 = arith.constant 0.000000e+00 : f32
    %13 = vector.broadcast %cst_8 : f32 to vector<64x64xf32>
    %14 = arith.cmpf ogt, %12, %13 : vector<64x64xf32>
    %15 = math.exp %12 : vector<64x64xf32>
    %cst_9 = arith.constant 1.000000e+00 : f32
    %16 = vector.broadcast %cst_9 : f32 to vector<64x64xf32>
    %17 = arith.subf %15, %16 : vector<64x64xf32>
    %18 = arith.select %14, %12, %17 : vector<64x64xi1>, vector<64x64xf32>
    %c1 = arith.constant 1 : index
    %c0_10 = arith.constant 0 : index
    %c0_11 = arith.constant 0 : index
    %19 = vector.load %arg2[%c1, %c0_10, %c0_11] : memref<4x64x64xf32, #tpu.memory_space<vmem>>, vector<1x64x64xf32>
    %20 = vector.shape_cast %19 : vector<1x64x64xf32> to vector<64x64xf32>
    %cst_12 = arith.constant dense<0.000000e+00> : vector<64x64xf32>
    %21 = tpu.matmul %18, %20, %cst_12 {dimension_numbers = #tpu.dot_dimension_numbers<[1], [0], [0], [1], [0, 0, 1, 1], [], []>} : vector<64x64xf32>, vector<64x64xf32>, vector<64x64xf32> -> vector<64x64xf32>
    %c1_13 = arith.constant 1 : index
    %c0_14 = arith.constant 0 : index
    %c0_15 = arith.constant 0 : index
    %22 = vector.load %arg3[%c1_13, %c0_14, %c0_15] : memref<4x1x64xf32, #tpu.memory_space<vmem>>, vector<1x1x64xf32>
    %23 = vector.shape_cast %22 : vector<1x1x64xf32> to vector<1x64xf32>
    %24 = vector.broadcast %23 : vector<1x64xf32> to vector<64x64xf32>
    %25 = arith.addf %21, %24 : vector<64x64xf32>
    %cst_16 = arith.constant 0.000000e+00 : f32
    %26 = vector.broadcast %cst_16 : f32 to vector<64x64xf32>
    %27 = arith.cmpf ogt, %25, %26 : vector<64x64xf32>
    %28 = math.exp %25 : vector<64x64xf32>
    %cst_17 = arith.constant 1.000000e+00 : f32
    %29 = vector.broadcast %cst_17 : f32 to vector<64x64xf32>
    %30 = arith.subf %28, %29 : vector<64x64xf32>
    %31 = arith.select %27, %25, %30 : vector<64x64xi1>, vector<64x64xf32>
    %c2 = arith.constant 2 : index
    %c0_18 = arith.constant 0 : index
    %c0_19 = arith.constant 0 : index
    %32 = vector.load %arg2[%c2, %c0_18, %c0_19] : memref<4x64x64xf32, #tpu.memory_space<vmem>>, vector<1x64x64xf32>
    %33 = vector.shape_cast %32 : vector<1x64x64xf32> to vector<64x64xf32>
    %cst_20 = arith.constant dense<0.000000e+00> : vector<64x64xf32>
    %34 = tpu.matmul %31, %33, %cst_20 {dimension_numbers = #tpu.dot_dimension_numbers<[1], [0], [0], [1], [0, 0, 1, 1], [], []>} : vector<64x64xf32>, vector<64x64xf32>, vector<64x64xf32> -> vector<64x64xf32>
    %c2_21 = arith.constant 2 : index
    %c0_22 = arith.constant 0 : index
    %c0_23 = arith.constant 0 : index
    %35 = vector.load %arg3[%c2_21, %c0_22, %c0_23] : memref<4x1x64xf32, #tpu.memory_space<vmem>>, vector<1x1x64xf32>
    %36 = vector.shape_cast %35 : vector<1x1x64xf32> to vector<1x64xf32>
    %37 = vector.broadcast %36 : vector<1x64xf32> to vector<64x64xf32>
    %38 = arith.addf %34, %37 : vector<64x64xf32>
    %cst_24 = arith.constant 0.000000e+00 : f32
    %39 = vector.broadcast %cst_24 : f32 to vector<64x64xf32>
    %40 = arith.cmpf ogt, %38, %39 : vector<64x64xf32>
    %41 = math.exp %38 : vector<64x64xf32>
    %cst_25 = arith.constant 1.000000e+00 : f32
    %42 = vector.broadcast %cst_25 : f32 to vector<64x64xf32>
    %43 = arith.subf %41, %42 : vector<64x64xf32>
    %44 = arith.select %40, %38, %43 : vector<64x64xi1>, vector<64x64xf32>
    %c3 = arith.constant 3 : index
    %c0_26 = arith.constant 0 : index
    %c0_27 = arith.constant 0 : index
    %45 = vector.load %arg2[%c3, %c0_26, %c0_27] : memref<4x64x64xf32, #tpu.memory_space<vmem>>, vector<1x64x64xf32>
    %46 = vector.shape_cast %45 : vector<1x64x64xf32> to vector<64x64xf32>
    %47 = vector.extract_strided_slice %46 {offsets = [0, 0], sizes = [1, 64], strides = [1, 1]} : vector<64x64xf32> to vector<1x64xf32>
    %c3_28 = arith.constant 3 : index
    %c0_29 = arith.constant 0 : index
    %c0_30 = arith.constant 0 : index
    %48 = vector.load %arg3[%c3_28, %c0_29, %c0_30] : memref<4x1x64xf32, #tpu.memory_space<vmem>>, vector<1x1x64xf32>
    %49 = vector.shape_cast %48 : vector<1x1x64xf32> to vector<1x64xf32>
    %50 = vector.extract_strided_slice %49 {offsets = [0, 0], sizes = [1, 1], strides = [1, 1]} : vector<1x64xf32> to vector<1x1xf32>
    %51 = vector.broadcast %47 : vector<1x64xf32> to vector<64x64xf32>
    %52 = arith.mulf %44, %51 : vector<64x64xf32>
    %cst_31 = arith.constant dense<0.000000e+00> : vector<64xf32>
    %53 = vector.multi_reduction <add>, %52, %cst_31 [1] : vector<64x64xf32> to vector<64xf32>
    %54 = vector.shape_cast %53 : vector<64xf32> to vector<64x1xf32>
    %55 = vector.broadcast %50 : vector<1x1xf32> to vector<64x1xf32>
    %56 = arith.addf %54, %55 : vector<64x1xf32>
    %cst_32 = arith.constant 0.000000e+00 : f32
    %57 = vector.broadcast %cst_32 : f32 to vector<64x1xf32>
    %58 = arith.cmpf ogt, %56, %57 : vector<64x1xf32>
    %59 = math.exp %56 : vector<64x1xf32>
    %cst_33 = arith.constant 1.000000e+00 : f32
    %60 = vector.broadcast %cst_33 : f32 to vector<64x1xf32>
    %61 = arith.subf %59, %60 : vector<64x1xf32>
    %62 = arith.select %58, %56, %61 : vector<64x1xi1>, vector<64x1xf32>
    %cst_34 = arith.constant 0.000000e+00 : f32
    %63 = vector.broadcast %cst_34 : f32 to vector<64x1xf32>
    %64 = arith.maximumf %62, %63 : vector<64x1xf32>
    %65 = arith.mulf %62, %4 : vector<64x1xf32>
    %66 = arith.subf %64, %65 : vector<64x1xf32>
    %67 = math.absf %62 : vector<64x1xf32>
    %cst_35 = arith.constant 0.000000e+00 : f32
    %68 = vector.broadcast %cst_35 : f32 to vector<64x1xf32>
    %69 = arith.subf %68, %67 : vector<64x1xf32>
    %70 = math.exp %69 : vector<64x1xf32>
    %71 = math.log1p %70 : vector<64x1xf32>
    %72 = arith.addf %66, %71 : vector<64x1xf32>
    %c0_36 = arith.constant 0 : index
    %c0_37 = arith.constant 0 : index
    %73 = vector.load %arg4[%c0_36, %c0_37] : memref<1x1xf32, #tpu.memory_space<vmem>>, vector<1x1xf32>
    %74 = arith.mulf %5, %72 : vector<64x1xf32>
    %cst_38 = arith.constant dense<0.000000e+00> : vector<1xf32>
    %75 = vector.multi_reduction <add>, %74, %cst_38 [0] : vector<64x1xf32> to vector<1xf32>
    %76 = vector.shape_cast %75 : vector<1xf32> to vector<1x1xf32>
    %77 = arith.addf %73, %76 : vector<1x1xf32>
    %c0_39 = arith.constant 0 : index
    %c0_40 = arith.constant 0 : index
    %78 = vector.load %arg4[%c0_39, %c0_40] : memref<1x1xf32, #tpu.memory_space<vmem>>, vector<1x1xf32>
    tpu.vector_store %arg4[%c0_39, %c0_40], %77 {strides = array<i32>} : memref<1x1xf32, #tpu.memory_space<vmem>>, vector<1x1xf32>,
    %c3_i32 = arith.constant 3 : i32
    %79 = arith.cmpi eq, %arg0, %c3_i32 : i32
    %80 = arith.extui %79 : i1 to i32
    %c0_i32_41 = arith.constant 0 : i32
    %81 = arith.cmpi ne, %80, %c0_i32_41 : i32
    scf.if %81 {
      %c0_42 = arith.constant 0 : index
      %c0_43 = arith.constant 0 : index
      %82 = vector.load %arg4[%c0_42, %c0_43] : memref<1x1xf32, #tpu.memory_space<vmem>>, vector<1x1xf32>
      %cst_44 = arith.constant 5.000000e-03 : f32
      %83 = vector.broadcast %cst_44 : f32 to vector<1x1xf32>
      %84 = arith.mulf %82, %83 : vector<1x1xf32>
      %c0_45 = arith.constant 0 : index
      %c0_46 = arith.constant 0 : index
      %85 = vector.load %arg4[%c0_45, %c0_46] : memref<1x1xf32, #tpu.memory_space<vmem>>, vector<1x1xf32>
      tpu.vector_store %arg4[%c0_45, %c0_46], %84 {strides = array<i32>} : memref<1x1xf32, #tpu.memory_space<vmem>>, vector<1x1xf32>,
    } else {
    }
    return
  }
  func.func @transform_0(%arg0: i32) -> (i32, i32) {
    %c0_i32 = arith.constant 0 : i32
    %c0_i32_0 = arith.constant 0 : i32
    return %arg0, %c0_i32 : i32, i32
  }
  func.func @transform_1(%arg0: i32) -> (i32, i32, i32) {
    %c0_i32 = arith.constant 0 : i32
    %c0_i32_0 = arith.constant 0 : i32
    %c0_i32_1 = arith.constant 0 : i32
    %c0_i32_2 = arith.constant 0 : i32
    return %c0_i32, %c0_i32_0, %c0_i32_1 : i32, i32, i32
  }
  func.func @transform_2(%arg0: i32) -> (i32, i32, i32) {
    %c0_i32 = arith.constant 0 : i32
    %c0_i32_0 = arith.constant 0 : i32
    %c0_i32_1 = arith.constant 0 : i32
    %c0_i32_2 = arith.constant 0 : i32
    return %c0_i32, %c0_i32_0, %c0_i32_1 : i32, i32, i32
  }
  func.func @transform_3(%arg0: i32) -> (i32, i32) {
    %c0_i32 = arith.constant 0 : i32
    %c0_i32_0 = arith.constant 0 : i32
    %c0_i32_1 = arith.constant 0 : i32
    return %c0_i32, %c0_i32_0 : i32, i32
  }
}

</mosaic_0001>

<llo_original>
// kernel: tpu_custom_call.1
$region0: #{tpu_custom_call.1}
  #allocation0 [shape = 'u32[]', space=smem, size = 0x4, offset = 0x4, fixed_abs, tag = 'smem constant byte address 0x4 - core index']
  #allocation1 [shape = 'u32[144,128]{1,0:T(1,128)}', space=vmem, size = 0x12000, scoped, tag = 'internal scratch']
  %s0 = inlined_call_operand.vmem [shape: f32[256,64], index: 0, kind: input, shape index: {}]
  %s1 = inlined_call_operand.vmem [shape: f32[4,64,64], index: 1, kind: input, shape index: {}]
  %s2 = inlined_call_operand.vmem [shape: f32[4,1,64], index: 2, kind: input, shape index: {}]
  %s3 = inlined_call_operand.hbm [shape: f32[1,1], index: 3, kind: output, shape index: {}]
  %s4 = sld [smem:[#allocation0]]
  $region53: #{tpu_custom_call.1} parent=0
    _
  %s6 = ssub.s32 1, %s4
  %s7 = scalar_select 0, %s6, %s4
  $region1: #{tpu_custom_call.1} parent=0
    #allocation2 [shape = 'u8[512]{0}', space=vmem, size = 0x400, scoped, tag = 'output window, operand 0, single buffered']
    #allocation3 [shape = 's32[2]{0}', space=sflag, size = 0x8, scoped, tag = 'scoped memory for tpu_custom_call.1']
    %8 = vsyncpa [#allocation3], 0
    loop: start=0, step=1, limit=6
    $region2: #{tpu_custom_call.1} parent=1 // loop_pre_header
      _
    $region3: #{tpu_custom_call.1} parent=1 // loop_header
      %s10 = sphi 0, %s14
      %p11 = scmp.ge.s32.totalorder %s10, 6
      %s20 = sphi 0, %s22
      %s23 = sphi 0, %s20
      %s24 = sphi 0, %s23
      %s40 = sphi 0, %s24
      %s44 = sphi 0, %s44
      %s46 = sphi 0, %s44
      %s47 = sphi 0, %s46
      %s61 = sphi 0, %s47
      %s65 = sphi 0, %s65
      %s67 = sphi 0, %s65
      %s68 = sphi 0, %s67
      %s82 = sphi 0, %s68
      %s86 = sphi 0, %s86
      %s88 = sphi 0, %s86
      %s89 = sphi 0, %s88
      %s103 = sphi 0, %s89
    $region4: #{tpu_custom_call.1} parent=1 // loop_header_branch
      %13 = sbr.rel (%p11) target = $region8
    $region5: #{tpu_custom_call.1} parent=1 // loop_body
      %s15 = ssub.s32 %s10, 1
      %s16 = ssub.s32 %s10, 2
      %s17 = sadd.s32 %s10, 1
      %s18 = ssub.s32 %s10, %s17
      %p19 = scmp.eq.s32.totalorder %s18, 0
      %s21 = sadd.s32 %s20, 1
      %s22 = scalar_select %p19, %s20, %s21
      %p25 = pneg %p19
      %p26 = scmp.eq.s32.totalorder %s10, 3
      %p27 = por %p25, %p26
      %p28 = scmp.ne.s32.totalorder %s20, %s23
      %p29 = scmp.eq.s32.totalorder %s10, 0
      %p30 = por %p28, %p29
      %p31 = scmp.ne.s32.totalorder %s20, %s23
      %p32 = scmp.eq.s32.totalorder %s15, 3
      %p33 = por %p31, %p32
      %p34 = scmp.ne.s32.totalorder %s23, %s24
      %p35 = scmp.eq.s32.totalorder %s15, 0
      %p36 = por %p34, %p35
      %p37 = scmp.ne.s32.totalorder %s23, %s24
      %p38 = scmp.eq.s32.totalorder %s16, 3
      %p39 = por %p37, %p38
      %p41 = scmp.ne.s32.totalorder %s24, %s40
      %p42 = scmp.eq.s32.totalorder %s16, 0
      %p43 = por %p41, %p42
      %s45 = sadd.s32 %s44, 1
      %p48 = scmp.eq.s32.totalorder %s10, 3
      %p49 = scmp.ne.s32.totalorder %s44, %s46
      %p50 = scmp.eq.s32.totalorder %s10, 0
      %p51 = por %p49, %p50
      %p52 = scmp.ne.s32.totalorder %s44, %s46
      %p53 = scmp.eq.s32.totalorder %s15, 3
      %p54 = por %p52, %p53
      %p55 = scmp.ne.s32.totalorder %s46, %s47
      %p56 = scmp.eq.s32.totalorder %s15, 0
      %p57 = por %p55, %p56
      %p58 = scmp.ne.s32.totalorder %s46, %s47
      %p59 = scmp.eq.s32.totalorder %s16, 3
      %p60 = por %p58, %p59
      %p62 = scmp.ne.s32.totalorder %s47, %s61
      %p63 = scmp.eq.s32.totalorder %s16, 0
      %p64 = por %p62, %p63
      %s66 = sadd.s32 %s65, 1
      %p69 = scmp.eq.s32.totalorder %s10, 3
      %p70 = scmp.ne.s32.totalorder %s65, %s67
      %p71 = scmp.eq.s32.totalorder %s10, 0
      %p72 = por %p70, %p71
      %p73 = scmp.ne.s32.totalorder %s65, %s67
      %p74 = scmp.eq.s32.totalorder %s15, 3
      %p75 = por %p73, %p74
      %p76 = scmp.ne.s32.totalorder %s67, %s68
      %p77 = scmp.eq.s32.totalorder %s15, 0
      %p78 = por %p76, %p77
      %p79 = scmp.ne.s32.totalorder %s67, %s68
      %p80 = scmp.eq.s32.totalorder %s16, 3
      %p81 = por %p79, %p80
      %p83 = scmp.ne.s32.totalorder %s68, %s82
      %p84 = scmp.eq.s32.totalorder %s16, 0
      %p85 = por %p83, %p84
      %s87 = sadd.s32 %s86, 1
      %p90 = scmp.eq.s32.totalorder %s10, 3
      %p91 = scmp.ne.s32.totalorder %s86, %s88
      %p92 = scmp.eq.s32.totalorder %s10, 0
      %p93 = por %p91, %p92
      %p94 = scmp.ne.s32.totalorder %s86, %s88
      %p95 = scmp.eq.s32.totalorder %s15, 3
      %p96 = por %p94, %p95
      %p97 = scmp.ne.s32.totalorder %s88, %s89
      %p98 = scmp.eq.s32.totalorder %s15, 0
      %p99 = por %p97, %p98
      %p100 = scmp.ne.s32.totalorder %s88, %s89
      %p101 = scmp.eq.s32.totalorder %s16, 3
      %p102 = por %p100, %p101
      %p104 = scmp.ne.s32.totalorder %s89, %s103
      %p105 = scmp.eq.s32.totalorder %s16, 0
      %p106 = por %p104, %p105
      %p107 = scmp.le.s32.totalorder 1, %s10
      %p108 = scmp.lt.s32.totalorder %s10, 5
      %p109 = pnand %p107, %p108
      %p110 = pneg %p109
      // Predicated region
      $region9: #{tpu_custom_call.1} parent=5 // pred_check
        _
      $region10: #{tpu_custom_call.1} parent=5 // pred_check_branch
        %112 = sbr.rel (%p109) target = $region12
      $region11: #{tpu_custom_call.1} parent=5 // pred_region
        %s113 = ssub.s32 %s10, 1
        // Predicated region
        $region13: #{tpu_custom_call.1} parent=11 // pred_check
          %p114 = pneg %p57
        $region14: #{tpu_custom_call.1} parent=11 // pred_check_branch
          %116 = sbr.rel (%p114) target = $region16
        $region15: #{tpu_custom_call.1} parent=11 // pred_region
          _
        $region16: #{tpu_custom_call.1} parent=11 // pred_fallthru
          _
        // Predicated region
        $region17: #{tpu_custom_call.1} parent=11 // pred_check
          %p117 = pneg %p78
        $region18: #{tpu_custom_call.1} parent=11 // pred_check_branch
          %119 = sbr.rel (%p117) target = $region20
        $region19: #{tpu_custom_call.1} parent=11 // pred_region
          _
        $region20: #{tpu_custom_call.1} parent=11 // pred_fallthru
          _
      $region12: #{tpu_custom_call.1} parent=5 // pred_fallthru
        _
      %p120 = scmp.lt.s32.totalorder %s10, 4
      // Predicated region
      $region21: #{tpu_custom_call.1} parent=5 // pred_check
        %p121 = pneg %p120
      $region22: #{tpu_custom_call.1} parent=5 // pred_check_branch
        %123 = sbr.rel (%p121) target = $region24
      $region23: #{tpu_custom_call.1} parent=5 // pred_region
        // Predicated region
        $region25: #{tpu_custom_call.1} parent=23 // pred_check
          %p124 = pneg %p30
        $region26: #{tpu_custom_call.1} parent=23 // pred_check_branch
          %126 = sbr.rel (%p124) target = $region28
        $region27: #{tpu_custom_call.1} parent=23 // pred_region
          %s127 = smul.u32 8, %s10
          %p128 = scmp.lt.s32.totalorder %s127, 31
          %s129 = scalar_select %p128, %s127, 31
          %s130 = smul.addr %s129, 8
          %s131 = scalar_lea.vmem %s0, %s130
          %s132 = smul.u32 8, %s10
        $region28: #{tpu_custom_call.1} parent=23 // pred_fallthru
          _
      $region24: #{tpu_custom_call.1} parent=5 // pred_fallthru
        _
      %p133 = scmp.le.s32.totalorder 1, %s10
      %p134 = scmp.lt.s32.totalorder %s10, 5
      %p135 = pnand %p133, %p134
      %p136 = pneg %p135
      // Predicated region
      $region29: #{tpu_custom_call.1} parent=5 // pred_check
        _
      $region30: #{tpu_custom_call.1} parent=5 // pred_check_branch
        %138 = sbr.rel (%p135) target = $region32
      $region31: #{tpu_custom_call.1} parent=5 // pred_region
        %s139 = ssub.s32 %s10, 1
        %s140 = smul.u32 8, %s15
        %p141 = scmp.lt.s32.totalorder %s140, 31
        %s142 = scalar_select %p141, %s140, 31
        %s143 = smul.addr %s142, 8
        %s144 = scalar_lea.vmem %s0, %s143
        %p145 = pneg %p36
        %p146 = pneg %p33
        %p147 = pneg %p57
        %p148 = pneg %p54
        %p149 = pneg %p78
        %p150 = pneg %p75
        %p151 = pneg %p99
        %p152 = pneg %p96
        %s153 = smul.u32 8, %s15
        %p154 = scmp.lt.s32.totalorder %s153, 31
        %s155 = scalar_select %p154, %s153, 31
        %s156 = smul.addr %s155, 8
        %s157 = scalar_lea.vmem %s0, %s156
        %s158 = smul.u32 8, %s15
        %p159 = scmp.eq.s32.totalorder %s15, 0
        // Predicated region
        $region33: #{tpu_custom_call.1} parent=31 // pred_check
          %p160 = pneg %p159
        $region34: #{tpu_custom_call.1} parent=31 // pred_check_branch
          %162 = sbr.rel (%p160) target = $region36
        $region35: #{tpu_custom_call.1} parent=31 // pred_region
          %vm163 = vcmask 0
          %164 = vst.msk [vmem:[#allocation2] sm:$0x1] %vm163, 0.0
        $region36: #{tpu_custom_call.1} parent=31 // pred_fallthru
          _
        %v165 = vld [vmem:[%s157] sm:$0xff]
        %v166 = vld [vmem:[%s157 + $0x8] sm:$0xff]
        %v167 = vld [vmem:[%s157 + $0x10] sm:$0xff]
        %v168 = vld [vmem:[%s157 + $0x18] sm:$0xff]
        %v169 = vld [vmem:[%s157 + $0x20] sm:$0xff]
        %v170 = vld [vmem:[%s157 + $0x28] sm:$0xff]
        %v171 = vld [vmem:[%s157 + $0x30] sm:$0xff]
        %v172 = vld [vmem:[%s157 + $0x38] sm:$0xff]
        %v173 = vld [vmem:[%s1] sm:$0xff]
        %v174 = vld [vmem:[%s1 + $0x8] sm:$0xff]
        %v175 = vld [vmem:[%s1 + $0x10] sm:$0xff]
        %v176 = vld [vmem:[%s1 + $0x18] sm:$0xff]
        %v177 = vld [vmem:[%s1 + $0x20] sm:$0xff]
        %v178 = vld [vmem:[%s1 + $0x28] sm:$0xff]
        %v179 = vld [vmem:[%s1 + $0x30] sm:$0xff]
        %v180 = vld [vmem:[%s1 + $0x38] sm:$0xff]
        %v181 = vld [vmem:[%s2] sm:$0x1]
        %v183 = vlaneseq
        %v184 = vshrl.u32 %v183, 7
        %v185 = vsub.s32 0, %v184
        %v186 = vrot.slane %v181, %v185
        %vm188 = vcmask 523264
        %v190 = vsel %vm188, %v165, 0
        %v193 = vsel %vm188, %v166, 0
        %v196 = vsel %vm188, %v167, 0
        %v199 = vsel %vm188, %v168, 0
        %v202 = vsel %vm188, %v169, 0
        %v205 = vsel %vm188, %v170, 0
        %v208 = vsel %vm188, %v171, 0
        %v211 = vsel %vm188, %v172, 0
        %213 = vmatprep.subr.mxu0 0.0
        %214 = vmatpush1.msra.mxu0 %v173
        %215 = vmatprep.subr.mxu0 0.0
        %216 = vmatpush1.msra.mxu0 %v174
        %217 = vmatprep.subr.mxu0 0.0
        %218 = vmatpush1.msra.mxu0 %v175
        %219 = vmatprep.subr.mxu0 0.0
        %220 = vmatpush1.msra.mxu0 %v176
        %221 = vmatprep.subr.mxu0 0.0
        %222 = vmatpush1.msra.mxu0 %v177
        %223 = vmatprep.subr.mxu0 0.0
        %224 = vmatpush1.msra.mxu0 %v178
        %225 = vmatprep.subr.mxu0 0.0
        %226 = vmatpush1.msra.mxu0 %v179
        %227 = vmatprep.subr.mxu0 0.0
        %228 = vmatpush1.msra.mxu0 %v180
        %229 = vmatprep.subr.mxu0 0.0
        %230 = vmatpush1.msra.mxu0 0.0
        %231 = vmatprep.subr.mxu0 0.0
        %232 = vmatpush1.msra.mxu0 0.0
        %233 = vmatprep.subr.mxu0 0.0
        %234 = vmatpush1.msra.mxu0 0.0
        %235 = vmatprep.subr.mxu0 0.0
        %236 = vmatpush1.msra.mxu0 0.0
        %237 = vmatprep.subr.mxu0 0.0
        %238 = vmatpush1.msra.mxu0 0.0
        %239 = vmatprep.subr.mxu0 0.0
        %240 = vmatpush1.msra.mxu0 0.0
        %241 = vmatprep.subr.mxu0 0.0
        %242 = vmatpush1.msra.mxu0 0.0
        %243 = vmatprep.subr.mxu0 0.0
        %244 = vmatpush1.msra.mxu0 0.0
        %245 = vmatprep.subr.mxu0 0.0
        %246 = vmatpush1.msra.mxu0 0.0
        %247 = vmatprep.subr.mxu0 0.0
        %248 = vmatpush1.msra.mxu0 0.0
        %249 = vmatprep.subr.mxu0 0.0
        %250 = vmatpush1.msra.mxu0 0.0
        %251 = vmatprep.subr.mxu0 0.0
        %252 = vmatpush1.msra.mxu0 0.0
        %253 = vmatprep.subr.mxu0 0.0
        %254 = vmatpush1.msra.mxu0 0.0
        %255 = vmatprep.subr.mxu0 0.0
        %256 = vmatpush1.msra.mxu0 0.0
        %257 = vmatprep.subr.mxu0 0.0
        %258 = vmatpush1.msra.mxu0 0.0
        %259 = vmatprep.subr.mxu0 0.0
        %260 = vmatpush1.msra.mxu0 0.0
        %261 = vmatprep.subr.mxu0 0.0
        %262 = vmatpush1.msra.mxu0 0.0
        %263 = vmatprep.subr.mxu0 0.0
        %264 = vmatpush1.msra.mxu0 0.0
        %265 = vmatprep.subr.mxu0 0.0
        %266 = vmatpush1.msra.mxu0 0.0
        %267 = vmatprep.subr.mxu0 0.0
        %268 = vmatpush1.msra.mxu0 0.0
        %269 = vmatprep.subr.mxu0 0.0
        %270 = vmatpush1.msra.mxu0 0.0
        %271 = vmatprep.subr.mxu0 0.0
        %272 = vmatpush1.msra.mxu0 0.0
        %273 = vmatprep.subr.mxu0 0.0
        %274 = vmatpush1.msra.mxu0 0.0
        %275 = vmatprep.subr.mxu0 0.0
        %276 = vmatpush1.msra.mxu0 0.0
        %277 = vmatprep.mubr.f32.mxu0 0.0
        %278 = vmatmul.mubr.f32.gmra.mrb[0].mxu0 %v190
        %v279 = vpop.f32.mrb[0].mxu0
        %v280 = vadd.f32 %v186, %v279
        %v281 = vpop.f32.mrb[0].mxu0
        %282 = vmatprep.mubr.f32.mxu0 0.0
        %283 = vmatmul.mubr.f32.gmra.mrb[0].mxu0 %v193
        %v284 = vpop.f32.mrb[0].mxu0
        %v285 = vadd.f32 %v186, %v284
        %v286 = vpop.f32.mrb[0].mxu0
        %287 = vmatprep.mubr.f32.mxu0 0.0
        %288 = vmatmul.mubr.f32.gmra.mrb[0].mxu0 %v196
        %v289 = vpop.f32.mrb[0].mxu0
        %v290 = vadd.f32 %v186, %v289
        %v291 = vpop.f32.mrb[0].mxu0
        %292 = vmatprep.mubr.f32.mxu0 0.0
        %293 = vmatmul.mubr.f32.gmra.mrb[0].mxu0 %v199
        %v294 = vpop.f32.mrb[0].mxu0
        %v295 = vadd.f32 %v186, %v294
        %v296 = vpop.f32.mrb[0].mxu0
        %297 = vmatprep.mubr.f32.mxu0 0.0
        %298 = vmatmul.mubr.f32.gmra.mrb[0].mxu0 %v202
        %v299 = vpop.f32.mrb[0].mxu0
        %v300 = vadd.f32 %v186, %v299
        %v301 = vpop.f32.mrb[0].mxu0
        %302 = vmatprep.mubr.f32.mxu0 0.0
        %303 = vmatmul.mubr.f32.gmra.mrb[0].mxu0 %v205
        %v304 = vpop.f32.mrb[0].mxu0
        %v305 = vadd.f32 %v186, %v304
        %v306 = vpop.f32.mrb[0].mxu0
        %307 = vmatprep.mubr.f32.mxu0 0.0
        %308 = vmatmul.mubr.f32.gmra.mrb[0].mxu0 %v208
        %v309 = vpop.f32.mrb[0].mxu0
        %v310 = vadd.f32 %v186, %v309
        %v311 = vpop.f32.mrb[0].mxu0
        %312 = vmatprep.mubr.f32.mxu0 0.0
        %313 = vmatmul.mubr.f32.gmra.mrb[0].mxu0 %v211
        %v314 = vpop.f32.mrb[0].mxu0
        %v315 = vadd.f32 %v186, %v314
        %v316 = vpop.f32.mrb[0].mxu0
        %317 = vdwg.mxu0
        %vm318 = vcmp.gt.f32.partialorder %v280, 0.0
        %vm319 = vcmp.gt.f32.partialorder %v285, 0.0
        %vm320 = vcmp.gt.f32.partialorder %v290, 0.0
        %vm321 = vcmp.gt.f32.partialorder %v295, 0.0
        %vm322 = vcmp.gt.f32.partialorder %v300, 0.0
        %vm323 = vcmp.gt.f32.partialorder %v305, 0.0
        %vm324 = vcmp.gt.f32.partialorder %v310, 0.0
        %vm325 = vcmp.gt.f32.partialorder %v315, 0.0
        %v326 = vmul.f32 %v280, 1.442695
        %v327 = vpow.pop %v326
        %v328 = vmul.f32 %v285, 1.442695
        %v329 = vpow.pop %v328
        %v330 = vmul.f32 %v290, 1.442695
        %v331 = vpow.pop %v330
        %v332 = vmul.f32 %v295, 1.442695
        %v333 = vpow.pop %v332
        %v334 = vmul.f32 %v300, 1.442695
        %v335 = vpow.pop %v334
        %v336 = vmul.f32 %v305, 1.442695
        %v337 = vpow.pop %v336
        %v338 = vmul.f32 %v310, 1.442695
        %v339 = vpow.pop %v338
        %v340 = vmul.f32 %v315, 1.442695
        %v341 = vpow.pop %v340
        %v342 = vsub.f32 %v327, 1.0
        %v343 = vsub.f32 %v329, 1.0
        %v344 = vsub.f32 %v331, 1.0
        %v345 = vsub.f32 %v333, 1.0
        %v346 = vsub.f32 %v335, 1.0
        %v347 = vsub.f32 %v337, 1.0
        %v348 = vsub.f32 %v339, 1.0
        %v349 = vsub.f32 %v341, 1.0
        %v350 = vsel %vm318, %v280, %v342
        %v351 = vsel %vm319, %v285, %v343
        %v352 = vsel %vm320, %v290, %v344
        %v353 = vsel %vm321, %v295, %v345
        %v354 = vsel %vm322, %v300, %v346
        %v355 = vsel %vm323, %v305, %v347
        %v356 = vsel %vm324, %v310, %v348
        %v357 = vsel %vm325, %v315, %v349
        %s358 = scalar_lea.vmem %s1, 64
        %v359 = vld [vmem:[%s358] sm:$0xff]
        %v360 = vld [vmem:[%s358 + $0x8] sm:$0xff]
        %v361 = vld [vmem:[%s358 + $0x10] sm:$0xff]
        %v362 = vld [vmem:[%s358 + $0x18] sm:$0xff]
        %v363 = vld [vmem:[%s358 + $0x20] sm:$0xff]
        %v364 = vld [vmem:[%s358 + $0x28] sm:$0xff]
        %v365 = vld [vmem:[%s358 + $0x30] sm:$0xff]
        %v366 = vld [vmem:[%s358 + $0x38] sm:$0xff]
        %s367 = scalar_lea.vmem %s2, 1
        %v368 = vld [vmem:[%s367] sm:$0x1]
        %v370 = vlaneseq
        %v371 = vshrl.u32 %v370, 7
        %v372 = vsub.s32 0, %v371
        %v373 = vrot.slane %v368, %v372
        %v376 = vsel %vm188, %v350, 0
        %v379 = vsel %vm188, %v351, 0
        %v382 = vsel %vm188, %v352, 0
        %v385 = vsel %vm188, %v353, 0
        %v388 = vsel %vm188, %v354, 0
        %v391 = vsel %vm188, %v355, 0
        %v394 = vsel %vm188, %v356, 0
        %v397 = vsel %vm188, %v357, 0
        %399 = vmatprep.subr.mxu0 0.0
        %400 = vmatpush1.msra.mxu0 %v359
        %401 = vmatprep.subr.mxu0 0.0
        %402 = vmatpush1.msra.mxu0 %v360
        %403 = vmatprep.subr.mxu0 0.0
        %404 = vmatpush1.msra.mxu0 %v361
        %405 = vmatprep.subr.mxu0 0.0
        %406 = vmatpush1.msra.mxu0 %v362
        %407 = vmatprep.subr.mxu0 0.0
        %408 = vmatpush1.msra.mxu0 %v363
        %409 = vmatprep.subr.mxu0 0.0
        %410 = vmatpush1.msra.mxu0 %v364
        %411 = vmatprep.subr.mxu0 0.0
        %412 = vmatpush1.msra.mxu0 %v365
        %413 = vmatprep.subr.mxu0 0.0
        %414 = vmatpush1.msra.mxu0 %v366
        %415 = vmatprep.subr.mxu0 0.0
        %416 = vmatpush1.msra.mxu0 0.0
        %417 = vmatprep.subr.mxu0 0.0
        %418 = vmatpush1.msra.mxu0 0.0
        %419 = vmatprep.subr.mxu0 0.0
        %420 = vmatpush1.msra.mxu0 0.0
        %421 = vmatprep.subr.mxu0 0.0
        %422 = vmatpush1.msra.mxu0 0.0
        %423 = vmatprep.subr.mxu0 0.0
        %424 = vmatpush1.msra.mxu0 0.0
        %425 = vmatprep.subr.mxu0 0.0
        %426 = vmatpush1.msra.mxu0 0.0
        %427 = vmatprep.subr.mxu0 0.0
        %428 = vmatpush1.msra.mxu0 0.0
        %429 = vmatprep.subr.mxu0 0.0
        %430 = vmatpush1.msra.mxu0 0.0
        %431 = vmatprep.subr.mxu0 0.0
        %432 = vmatpush1.msra.mxu0 0.0
        %433 = vmatprep.subr.mxu0 0.0
        %434 = vmatpush1.msra.mxu0 0.0
        %435 = vmatprep.subr.mxu0 0.0
        %436 = vmatpush1.msra.mxu0 0.0
        %437 = vmatprep.subr.mxu0 0.0
        %438 = vmatpush1.msra.mxu0 0.0
        %439 = vmatprep.subr.mxu0 0.0
        %440 = vmatpush1.msra.mxu0 0.0
        %441 = vmatprep.subr.mxu0 0.0
        %442 = vmatpush1.msra.mxu0 0.0
        %443 = vmatprep.subr.mxu0 0.0
        %444 = vmatpush1.msra.mxu0 0.0
        %445 = vmatprep.subr.mxu0 0.0
        %446 = vmatpush1.msra.mxu0 0.0
        %447 = vmatprep.subr.mxu0 0.0
        %448 = vmatpush1.msra.mxu0 0.0
        %449 = vmatprep.subr.mxu0 0.0
        %450 = vmatpush1.msra.mxu0 0.0
        %451 = vmatprep.subr.mxu0 0.0
        %452 = vmatpush1.msra.mxu0 0.0
        %453 = vmatprep.subr.mxu0 0.0
        %454 = vmatpush1.msra.mxu0 0.0
        %455 = vmatprep.subr.mxu0 0.0
        %456 = vmatpush1.msra.mxu0 0.0
        %457 = vmatprep.subr.mxu0 0.0
        %458 = vmatpush1.msra.mxu0 0.0
        %459 = vmatprep.subr.mxu0 0.0
        %460 = vmatpush1.msra.mxu0 0.0
        %461 = vmatprep.subr.mxu0 0.0
        %462 = vmatpush1.msra.mxu0 0.0
        %463 = vmatprep.mubr.f32.mxu0 0.0
        %464 = vmatmul.mubr.f32.gmra.mrb[0].mxu0 %v376
        %v465 = vpop.f32.mrb[0].mxu0
        %v466 = vadd.f32 %v373, %v465
        %v467 = vpop.f32.mrb[0].mxu0
        %468 = vmatprep.mubr.f32.mxu0 0.0
        %469 = vmatmul.mubr.f32.gmra.mrb[0].mxu0 %v379
        %v470 = vpop.f32.mrb[0].mxu0
        %v471 = vadd.f32 %v373, %v470
        %v472 = vpop.f32.mrb[0].mxu0
        %473 = vmatprep.mubr.f32.mxu0 0.0
        %474 = vmatmul.mubr.f32.gmra.mrb[0].mxu0 %v382
        %v475 = vpop.f32.mrb[0].mxu0
        %v476 = vadd.f32 %v373, %v475
        %v477 = vpop.f32.mrb[0].mxu0
        %478 = vmatprep.mubr.f32.mxu0 0.0
        %479 = vmatmul.mubr.f32.gmra.mrb[0].mxu0 %v385
        %v480 = vpop.f32.mrb[0].mxu0
        %v481 = vadd.f32 %v373, %v480
        %v482 = vpop.f32.mrb[0].mxu0
        %483 = vmatprep.mubr.f32.mxu0 0.0
        %484 = vmatmul.mubr.f32.gmra.mrb[0].mxu0 %v388
        %v485 = vpop.f32.mrb[0].mxu0
        %v486 = vadd.f32 %v373, %v485
        %v487 = vpop.f32.mrb[0].mxu0
        %488 = vmatprep.mubr.f32.mxu0 0.0
        %489 = vmatmul.mubr.f32.gmra.mrb[0].mxu0 %v391
        %v490 = vpop.f32.mrb[0].mxu0
        %v491 = vadd.f32 %v373, %v490
        %v492 = vpop.f32.mrb[0].mxu0
        %493 = vmatprep.mubr.f32.mxu0 0.0
        %494 = vmatmul.mubr.f32.gmra.mrb[0].mxu0 %v394
        %v495 = vpop.f32.mrb[0].mxu0
        %v496 = vadd.f32 %v373, %v495
        %v497 = vpop.f32.mrb[0].mxu0
        %498 = vmatprep.mubr.f32.mxu0 0.0
        %499 = vmatmul.mubr.f32.gmra.mrb[0].mxu0 %v397
        %v500 = vpop.f32.mrb[0].mxu0
        %v501 = vadd.f32 %v373, %v500
        %v502 = vpop.f32.mrb[0].mxu0
        %503 = vdwg.mxu0
        %vm504 = vcmp.gt.f32.partialorder %v466, 0.0
        %vm505 = vcmp.gt.f32.partialorder %v471, 0.0
        %vm506 = vcmp.gt.f32.partialorder %v476, 0.0
        %vm507 = vcmp.gt.f32.partialorder %v481, 0.0
        %vm508 = vcmp.gt.f32.partialorder %v486, 0.0
        %vm509 = vcmp.gt.f32.partialorder %v491, 0.0
        %vm510 = vcmp.gt.f32.partialorder %v496, 0.0
        %vm511 = vcmp.gt.f32.partialorder %v501, 0.0
        %v512 = vmul.f32 %v466, 1.442695
        %v513 = vpow.pop %v512
        %v514 = vmul.f32 %v471, 1.442695
        %v515 = vpow.pop %v514
        %v516 = vmul.f32 %v476, 1.442695
        %v517 = vpow.pop %v516
        %v518 = vmul.f32 %v481, 1.442695
        %v519 = vpow.pop %v518
        %v520 = vmul.f32 %v486, 1.442695
        %v521 = vpow.pop %v520
        %v522 = vmul.f32 %v491, 1.442695
        %v523 = vpow.pop %v522
        %v524 = vmul.f32 %v496, 1.442695
        %v525 = vpow.pop %v524
        %v526 = vmul.f32 %v501, 1.442695
        %v527 = vpow.pop %v526
        %v528 = vsub.f32 %v513, 1.0
        %v529 = vsub.f32 %v515, 1.0
        %v530 = vsub.f32 %v517, 1.0
        %v531 = vsub.f32 %v519, 1.0
        %v532 = vsub.f32 %v521, 1.0
        %v533 = vsub.f32 %v523, 1.0
        %v534 = vsub.f32 %v525, 1.0
        %v535 = vsub.f32 %v527, 1.0
        %v536 = vsel %vm504, %v466, %v528
        %v537 = vsel %vm505, %v471, %v529
        %v538 = vsel %vm506, %v476, %v530
        %v539 = vsel %vm507, %v481, %v531
        %v540 = vsel %vm508, %v486, %v532
        %v541 = vsel %vm509, %v491, %v533
        %v542 = vsel %vm510, %v496, %v534
        %v543 = vsel %vm511, %v501, %v535
        %s544 = scalar_lea.vmem %s1, 128
        %v545 = vld [vmem:[%s544] sm:$0xff]
        %v546 = vld [vmem:[%s544 + $0x8] sm:$0xff]
        %v547 = vld [vmem:[%s544 + $0x10] sm:$0xff]
        %v548 = vld [vmem:[%s544 + $0x18] sm:$0xff]
        %v549 = vld [vmem:[%s544 + $0x20] sm:$0xff]
        %v550 = vld [vmem:[%s544 + $0x28] sm:$0xff]
        %v551 = vld [vmem:[%s544 + $0x30] sm:$0xff]
        %v552 = vld [vmem:[%s544 + $0x38] sm:$0xff]
        %s553 = scalar_lea.vmem %s2, 2
        %v554 = vld [vmem:[%s553] sm:$0x1]
        %v556 = vlaneseq
        %v557 = vshrl.u32 %v556, 7
        %v558 = vsub.s32 0, %v557
        %v559 = vrot.slane %v554, %v558
        %v562 = vsel %vm188, %v536, 0
        %v565 = vsel %vm188, %v537, 0
        %v568 = vsel %vm188, %v538, 0
        %v571 = vsel %vm188, %v539, 0
        %v574 = vsel %vm188, %v540, 0
        %v577 = vsel %vm188, %v541, 0
        %v580 = vsel %vm188, %v542, 0
        %v583 = vsel %vm188, %v543, 0
        %585 = vmatprep.subr.mxu0 0.0
        %586 = vmatpush1.msra.mxu0 %v545
        %587 = vmatprep.subr.mxu0 0.0
        %588 = vmatpush1.msra.mxu0 %v546
        %589 = vmatprep.subr.mxu0 0.0
        %590 = vmatpush1.msra.mxu0 %v547
        %591 = vmatprep.subr.mxu0 0.0
        %592 = vmatpush1.msra.mxu0 %v548
        %593 = vmatprep.subr.mxu0 0.0
        %594 = vmatpush1.msra.mxu0 %v549
        %595 = vmatprep.subr.mxu0 0.0
        %596 = vmatpush1.msra.mxu0 %v550
        %597 = vmatprep.subr.mxu0 0.0
        %598 = vmatpush1.msra.mxu0 %v551
        %599 = vmatprep.subr.mxu0 0.0
        %600 = vmatpush1.msra.mxu0 %v552
        %601 = vmatprep.subr.mxu0 0.0
        %602 = vmatpush1.msra.mxu0 0.0
        %603 = vmatprep.subr.mxu0 0.0
        %604 = vmatpush1.msra.mxu0 0.0
        %605 = vmatprep.subr.mxu0 0.0
        %606 = vmatpush1.msra.mxu0 0.0
        %607 = vmatprep.subr.mxu0 0.0
        %608 = vmatpush1.msra.mxu0 0.0
        %609 = vmatprep.subr.mxu0 0.0
        %610 = vmatpush1.msra.mxu0 0.0
        %611 = vmatprep.subr.mxu0 0.0
        %612 = vmatpush1.msra.mxu0 0.0
        %613 = vmatprep.subr.mxu0 0.0
        %614 = vmatpush1.msra.mxu0 0.0
        %615 = vmatprep.subr.mxu0 0.0
        %616 = vmatpush1.msra.mxu0 0.0
        %617 = vmatprep.subr.mxu0 0.0
        %618 = vmatpush1.msra.mxu0 0.0
        %619 = vmatprep.subr.mxu0 0.0
        %620 = vmatpush1.msra.mxu0 0.0
        %621 = vmatprep.subr.mxu0 0.0
        %622 = vmatpush1.msra.mxu0 0.0
        %623 = vmatprep.subr.mxu0 0.0
        %624 = vmatpush1.msra.mxu0 0.0
        %625 = vmatprep.subr.mxu0 0.0
        %626 = vmatpush1.msra.mxu0 0.0
        %627 = vmatprep.subr.mxu0 0.0
        %628 = vmatpush1.msra.mxu0 0.0
        %629 = vmatprep.subr.mxu0 0.0
        %630 = vmatpush1.msra.mxu0 0.0
        %631 = vmatprep.subr.mxu0 0.0
        %632 = vmatpush1.msra.mxu0 0.0
        %633 = vmatprep.subr.mxu0 0.0
        %634 = vmatpush1.msra.mxu0 0.0
        %635 = vmatprep.subr.mxu0 0.0
        %636 = vmatpush1.msra.mxu0 0.0
        %637 = vmatprep.subr.mxu0 0.0
        %638 = vmatpush1.msra.mxu0 0.0
        %639 = vmatprep.subr.mxu0 0.0
        %640 = vmatpush1.msra.mxu0 0.0
        %641 = vmatprep.subr.mxu0 0.0
        %642 = vmatpush1.msra.mxu0 0.0
        %643 = vmatprep.subr.mxu0 0.0
        %644 = vmatpush1.msra.mxu0 0.0
        %645 = vmatprep.subr.mxu0 0.0
        %646 = vmatpush1.msra.mxu0 0.0
        %647 = vmatprep.subr.mxu0 0.0
        %648 = vmatpush1.msra.mxu0 0.0
        %649 = vmatprep.mubr.f32.mxu0 0.0
        %650 = vmatmul.mubr.f32.gmra.mrb[0].mxu0 %v562
        %v651 = vpop.f32.mrb[0].mxu0
        %v652 = vadd.f32 %v559, %v651
        %v653 = vpop.f32.mrb[0].mxu0
        %654 = vmatprep.mubr.f32.mxu0 0.0
        %655 = vmatmul.mubr.f32.gmra.mrb[0].mxu0 %v565
        %v656 = vpop.f32.mrb[0].mxu0
        %v657 = vadd.f32 %v559, %v656
        %v658 = vpop.f32.mrb[0].mxu0
        %659 = vmatprep.mubr.f32.mxu0 0.0
        %660 = vmatmul.mubr.f32.gmra.mrb[0].mxu0 %v568
        %v661 = vpop.f32.mrb[0].mxu0
        %v662 = vadd.f32 %v559, %v661
        %v663 = vpop.f32.mrb[0].mxu0
        %664 = vmatprep.mubr.f32.mxu0 0.0
        %665 = vmatmul.mubr.f32.gmra.mrb[0].mxu0 %v571
        %v666 = vpop.f32.mrb[0].mxu0
        %v667 = vadd.f32 %v559, %v666
        %v668 = vpop.f32.mrb[0].mxu0
        %669 = vmatprep.mubr.f32.mxu0 0.0
        %670 = vmatmul.mubr.f32.gmra.mrb[0].mxu0 %v574
        %v671 = vpop.f32.mrb[0].mxu0
        %v672 = vadd.f32 %v559, %v671
        %v673 = vpop.f32.mrb[0].mxu0
        %674 = vmatprep.mubr.f32.mxu0 0.0
        %675 = vmatmul.mubr.f32.gmra.mrb[0].mxu0 %v577
        %v676 = vpop.f32.mrb[0].mxu0
        %v677 = vadd.f32 %v559, %v676
        %v678 = vpop.f32.mrb[0].mxu0
        %679 = vmatprep.mubr.f32.mxu0 0.0
        %680 = vmatmul.mubr.f32.gmra.mrb[0].mxu0 %v580
        %v681 = vpop.f32.mrb[0].mxu0
        %v682 = vadd.f32 %v559, %v681
        %v683 = vpop.f32.mrb[0].mxu0
        %684 = vmatprep.mubr.f32.mxu0 0.0
        %685 = vmatmul.mubr.f32.gmra.mrb[0].mxu0 %v583
        %v686 = vpop.f32.mrb[0].mxu0
        %v687 = vadd.f32 %v559, %v686
        %v688 = vpop.f32.mrb[0].mxu0
        %689 = vdwg.mxu0
        %vm690 = vcmp.gt.f32.partialorder %v652, 0.0
        %vm691 = vcmp.gt.f32.partialorder %v657, 0.0
        %vm692 = vcmp.gt.f32.partialorder %v662, 0.0
        %vm693 = vcmp.gt.f32.partialorder %v667, 0.0
        %vm694 = vcmp.gt.f32.partialorder %v672, 0.0
        %vm695 = vcmp.gt.f32.partialorder %v677, 0.0
        %vm696 = vcmp.gt.f32.partialorder %v682, 0.0
        %vm697 = vcmp.gt.f32.partialorder %v687, 0.0
        %v698 = vmul.f32 %v652, 1.442695
        %v699 = vpow.pop %v698
        %v700 = vmul.f32 %v657, 1.442695
        %v701 = vpow.pop %v700
        %v702 = vmul.f32 %v662, 1.442695
        %v703 = vpow.pop %v702
        %v704 = vmul.f32 %v667, 1.442695
        %v705 = vpow.pop %v704
        %v706 = vmul.f32 %v672, 1.442695
        %v707 = vpow.pop %v706
        %v708 = vmul.f32 %v677, 1.442695
        %v709 = vpow.pop %v708
        %v710 = vmul.f32 %v682, 1.442695
        %v711 = vpow.pop %v710
        %v712 = vmul.f32 %v687, 1.442695
        %v713 = vpow.pop %v712
        %v714 = vsub.f32 %v699, 1.0
        %v715 = vsub.f32 %v701, 1.0
        %v716 = vsub.f32 %v703, 1.0
        %v717 = vsub.f32 %v705, 1.0
        %v718 = vsub.f32 %v707, 1.0
        %v719 = vsub.f32 %v709, 1.0
        %v720 = vsub.f32 %v711, 1.0
        %v721 = vsub.f32 %v713, 1.0
        %v722 = vsel %vm690, %v652, %v714
        %v723 = vsel %vm691, %v657, %v715
        %v724 = vsel %vm692, %v662, %v716
        %v725 = vsel %vm693, %v667, %v717
        %v726 = vsel %vm694, %v672, %v718
        %v727 = vsel %vm695, %v677, %v719
        %v728 = vsel %vm696, %v682, %v720
        %v729 = vsel %vm697, %v687, %v721
        %s730 = scalar_lea.vmem %s1, 192
        %v731 = vld [vmem:[%s730] sm:$0xff]
        %s732 = scalar_lea.vmem %s2, 3
        %v733 = vld [vmem:[%s732] sm:$0x1]
        %v734 = vlaneseq
        %v735 = vshrl.u32 %v734, 7
        %v736 = vsub.s32 0, %v735
        %v737 = vrot.slane %v731, %v736
        %v738 = vmul.f32 %v722, %v737
        %v739 = vmul.f32 %v723, %v737
        %v740 = vmul.f32 %v724, %v737
        %v741 = vmul.f32 %v725, %v737
        %v742 = vmul.f32 %v726, %v737
        %v743 = vmul.f32 %v727, %v737
        %v744 = vmul.f32 %v728, %v737
        %v745 = vmul.f32 %v729, %v737
        %v746 = vsel %vm188, %v738, 0.0
        %747 = vadd.xlane.f32.xlu0 %v746
        %v748 = vpop.xlane.xlu0 %747
        %v749 = vsel %vm188, %v739, 0.0
        %750 = vadd.xlane.f32.xlu0 %v749
        %v751 = vpop.xlane.xlu0 %750
        %v752 = vsel %vm188, %v740, 0.0
        %753 = vadd.xlane.f32.xlu0 %v752
        %v754 = vpop.xlane.xlu0 %753
        %v755 = vsel %vm188, %v741, 0.0
        %756 = vadd.xlane.f32.xlu0 %v755
        %v757 = vpop.xlane.xlu0 %756
        %v758 = vsel %vm188, %v742, 0.0
        %759 = vadd.xlane.f32.xlu0 %v758
        %v760 = vpop.xlane.xlu0 %759
        %v761 = vsel %vm188, %v743, 0.0
        %762 = vadd.xlane.f32.xlu0 %v761
        %v763 = vpop.xlane.xlu0 %762
        %v764 = vsel %vm188, %v744, 0.0
        %765 = vadd.xlane.f32.xlu0 %v764
        %v766 = vpop.xlane.xlu0 %765
        %v767 = vsel %vm188, %v745, 0.0
        %768 = vadd.xlane.f32.xlu0 %v767
        %v769 = vpop.xlane.xlu0 %768
        %v771 = vlaneseq
        %v772 = vshrl.u32 %v771, 7
        %v773 = vsub.s32 0, %v772
        %v774 = vrot.slane %v733, %v773
        %v776 = vadd.f32 %v748, %v774
        %v777 = vadd.f32 %v751, %v774
        %v778 = vadd.f32 %v754, %v774
        %v779 = vadd.f32 %v757, %v774
        %v780 = vadd.f32 %v760, %v774
        %v781 = vadd.f32 %v763, %v774
        %v782 = vadd.f32 %v766, %v774
        %v783 = vadd.f32 %v769, %v774
        %vm784 = vcmp.gt.f32.partialorder %v776, 0.0
        %vm785 = vcmp.gt.f32.partialorder %v777, 0.0
        %vm786 = vcmp.gt.f32.partialorder %v778, 0.0
        %vm787 = vcmp.gt.f32.partialorder %v779, 0.0
        %vm788 = vcmp.gt.f32.partialorder %v780, 0.0
        %vm789 = vcmp.gt.f32.partialorder %v781, 0.0
        %vm790 = vcmp.gt.f32.partialorder %v782, 0.0
        %vm791 = vcmp.gt.f32.partialorder %v783, 0.0
        %v792 = vmul.f32 %v776, 1.442695
        %v793 = vpow.pop %v792
        %v794 = vmul.f32 %v777, 1.442695
        %v795 = vpow.pop %v794
        %v796 = vmul.f32 %v778, 1.442695
        %v797 = vpow.pop %v796
        %v798 = vmul.f32 %v779, 1.442695
        %v799 = vpow.pop %v798
        %v800 = vmul.f32 %v780, 1.442695
        %v801 = vpow.pop %v800
        %v802 = vmul.f32 %v781, 1.442695
        %v803 = vpow.pop %v802
        %v804 = vmul.f32 %v782, 1.442695
        %v805 = vpow.pop %v804
        %v806 = vmul.f32 %v783, 1.442695
        %v807 = vpow.pop %v806
        %v808 = vsub.f32 %v793, 1.0
        %v809 = vsub.f32 %v795, 1.0
        %v810 = vsub.f32 %v797, 1.0
        %v811 = vsub.f32 %v799, 1.0
        %v812 = vsub.f32 %v801, 1.0
        %v813 = vsub.f32 %v803, 1.0
        %v814 = vsub.f32 %v805, 1.0
        %v815 = vsub.f32 %v807, 1.0
        %v816 = vsel %vm784, %v776, %v808
        %v817 = vsel %vm785, %v777, %v809
        %v818 = vsel %vm786, %v778, %v810
        %v819 = vsel %vm787, %v779, %v811
        %v820 = vsel %vm788, %v780, %v812
        %v821 = vsel %vm789, %v781, %v813
        %v822 = vsel %vm790, %v782, %v814
        %v823 = vsel %vm791, %v783, %v815
        %v824 = vmax.f32 %v816, 0.0
        %v825 = vmax.f32 %v817, 0.0
        %v826 = vmax.f32 %v818, 0.0
        %v827 = vmax.f32 %v819, 0.0
        %v828 = vmax.f32 %v820, 0.0
        %v829 = vmax.f32 %v821, 0.0
        %v830 = vmax.f32 %v822, 0.0
        %v831 = vmax.f32 %v823, 0.0
        %832 = vrot.lane.b32.xlu0 %v165, 96
        %v833 = vpop.permute.xlu0 %832
        %834 = vrot.lane.b32.xlu0 %v166, 96
        %v835 = vpop.permute.xlu0 %834
        %836 = vrot.lane.b32.xlu0 %v167, 96
        %v837 = vpop.permute.xlu0 %836
        %838 = vrot.lane.b32.xlu0 %v168, 96
        %v839 = vpop.permute.xlu0 %838
        %840 = vrot.lane.b32.xlu0 %v169, 96
        %v841 = vpop.permute.xlu0 %840
        %842 = vrot.lane.b32.xlu0 %v170, 96
        %v843 = vpop.permute.xlu0 %842
        %844 = vrot.lane.b32.xlu0 %v171, 96
        %v845 = vpop.permute.xlu0 %844
        %846 = vrot.lane.b32.xlu0 %v172, 96
        %v847 = vpop.permute.xlu0 %846
        %v856 = vmul.f32 %v816, %v833
        %v857 = vmul.f32 %v817, %v835
        %v858 = vmul.f32 %v818, %v837
        %v859 = vmul.f32 %v819, %v839
        %v860 = vmul.f32 %v820, %v841
        %v861 = vmul.f32 %v821, %v843
        %v862 = vmul.f32 %v822, %v845
        %v863 = vmul.f32 %v823, %v847
        %v864 = vsub.f32 %v824, %v856
        %v865 = vsub.f32 %v825, %v857
        %v866 = vsub.f32 %v826, %v858
        %v867 = vsub.f32 %v827, %v859
        %v868 = vsub.f32 %v828, %v860
        %v869 = vsub.f32 %v829, %v861
        %v870 = vsub.f32 %v830, %v862
        %v871 = vsub.f32 %v831, %v863
        %v872 = vand.u32 2147483647, %v816
        %v873 = vand.u32 2147483647, %v817
        %v874 = vand.u32 2147483647, %v818
        %v875 = vand.u32 2147483647, %v819
        %v876 = vand.u32 2147483647, %v820
        %v877 = vand.u32 2147483647, %v821
        %v878 = vand.u32 2147483647, %v822
        %v879 = vand.u32 2147483647, %v823
        %v880 = vsub.f32 0.0, %v872
        %v881 = vsub.f32 0.0, %v873
        %v882 = vsub.f32 0.0, %v874
        %v883 = vsub.f32 0.0, %v875
        %v884 = vsub.f32 0.0, %v876
        %v885 = vsub.f32 0.0, %v877
        %v886 = vsub.f32 0.0, %v878
        %v887 = vsub.f32 0.0, %v879
        %v888 = vmul.f32 %v880, 1.442695
        %v889 = vpow.pop %v888
        %v890 = vmul.f32 %v881, 1.442695
        %v891 = vpow.pop %v890
        %v892 = vmul.f32 %v882, 1.442695
        %v893 = vpow.pop %v892
        %v894 = vmul.f32 %v883, 1.442695
        %v895 = vpow.pop %v894
        %v896 = vmul.f32 %v884, 1.442695
        %v897 = vpow.pop %v896
        %v898 = vmul.f32 %v885, 1.442695
        %v899 = vpow.pop %v898
        %v900 = vmul.f32 %v886, 1.442695
        %v901 = vpow.pop %v900
        %v902 = vmul.f32 %v887, 1.442695
        %v903 = vpow.pop %v902
        %v904 = vadd.f32 %v889, 1.0
        %v905 = vlog2.pop %v904
        %v906 = vmul.f32 %v905, 0.6931472
        %v907 = vmul.f32 -0.5, %v889
        %v908 = vadd.f32 %v907, 1.0
        %v909 = vmul.f32 %v908, %v889
        %v910 = vand.u32 2147483647, %v889
        %vm911 = vcmp.lt.f32.partialorder %v910, 0.0004427343
        %v912 = vsel %vm911, %v909, %v906
        %v913 = vadd.f32 %v891, 1.0
        %v914 = vlog2.pop %v913
        %v915 = vmul.f32 %v914, 0.6931472
        %v916 = vmul.f32 -0.5, %v891
        %v917 = vadd.f32 %v916, 1.0
        %v918 = vmul.f32 %v917, %v891
        %v919 = vand.u32 2147483647, %v891
        %vm920 = vcmp.lt.f32.partialorder %v919, 0.0004427343
        %v921 = vsel %vm920, %v918, %v915
        %v922 = vadd.f32 %v893, 1.0
        %v923 = vlog2.pop %v922
        %v924 = vmul.f32 %v923, 0.6931472
        %v925 = vmul.f32 -0.5, %v893
        %v926 = vadd.f32 %v925, 1.0
        %v927 = vmul.f32 %v926, %v893
        %v928 = vand.u32 2147483647, %v893
        %vm929 = vcmp.lt.f32.partialorder %v928, 0.0004427343
        %v930 = vsel %vm929, %v927, %v924
        %v931 = vadd.f32 %v895, 1.0
        %v932 = vlog2.pop %v931
        %v933 = vmul.f32 %v932, 0.6931472
        %v934 = vmul.f32 -0.5, %v895
        %v935 = vadd.f32 %v934, 1.0
        %v936 = vmul.f32 %v935, %v895
        %v937 = vand.u32 2147483647, %v895
        %vm938 = vcmp.lt.f32.partialorder %v937, 0.0004427343
        %v939 = vsel %vm938, %v936, %v933
        %v940 = vadd.f32 %v897, 1.0
        %v941 = vlog2.pop %v940
        %v942 = vmul.f32 %v941, 0.6931472
        %v943 = vmul.f32 -0.5, %v897
        %v944 = vadd.f32 %v943, 1.0
        %v945 = vmul.f32 %v944, %v897
        %v946 = vand.u32 2147483647, %v897
        %vm947 = vcmp.lt.f32.partialorder %v946, 0.0004427343
        %v948 = vsel %vm947, %v945, %v942
        %v949 = vadd.f32 %v899, 1.0
        %v950 = vlog2.pop %v949
        %v951 = vmul.f32 %v950, 0.6931472
        %v952 = vmul.f32 -0.5, %v899
        %v953 = vadd.f32 %v952, 1.0
        %v954 = vmul.f32 %v953, %v899
        %v955 = vand.u32 2147483647, %v899
        %vm956 = vcmp.lt.f32.partialorder %v955, 0.0004427343
        %v957 = vsel %vm956, %v954, %v951
        %v958 = vadd.f32 %v901, 1.0
        %v959 = vlog2.pop %v958
        %v960 = vmul.f32 %v959, 0.6931472
        %v961 = vmul.f32 -0.5, %v901
        %v962 = vadd.f32 %v961, 1.0
        %v963 = vmul.f32 %v962, %v901
        %v964 = vand.u32 2147483647, %v901
        %vm965 = vcmp.lt.f32.partialorder %v964, 0.0004427343
        %v966 = vsel %vm965, %v963, %v960
        %v967 = vadd.f32 %v903, 1.0
        %v968 = vlog2.pop %v967
        %v969 = vmul.f32 %v968, 0.6931472
        %v970 = vmul.f32 -0.5, %v903
        %v971 = vadd.f32 %v970, 1.0
        %v972 = vmul.f32 %v971, %v903
        %v973 = vand.u32 2147483647, %v903
        %vm974 = vcmp.lt.f32.partialorder %v973, 0.0004427343
        %v975 = vsel %vm974, %v972, %v969
        %v976 = vadd.f32 %v864, %v912
        %v977 = vadd.f32 %v865, %v921
        %v978 = vadd.f32 %v866, %v930
        %v979 = vadd.f32 %v867, %v939
        %v980 = vadd.f32 %v868, %v948
        %v981 = vadd.f32 %v869, %v957
        %v982 = vadd.f32 %v870, %v966
        %v983 = vadd.f32 %v871, %v975
        %v984 = vld [vmem:[#allocation2] sm:$0x1]
        %993 = vrot.lane.b32.xlu0 %v976, 33
        %v994 = vpop.permute.xlu0 %993
        %995 = vrot.lane.b32.xlu0 %v977, 33
        %v996 = vpop.permute.xlu0 %995
        %997 = vrot.lane.b32.xlu0 %v978, 33
        %v998 = vpop.permute.xlu0 %997
        %999 = vrot.lane.b32.xlu0 %v979, 33
        %v1000 = vpop.permute.xlu0 %999
        %1001 = vrot.lane.b32.xlu0 %v980, 33
        %v1002 = vpop.permute.xlu0 %1001
        %1003 = vrot.lane.b32.xlu0 %v981, 33
        %v1004 = vpop.permute.xlu0 %1003
        %1005 = vrot.lane.b32.xlu0 %v982, 33
        %v1006 = vpop.permute.xlu0 %1005
        %1007 = vrot.lane.b32.xlu0 %v983, 33
        %v1008 = vpop.permute.xlu0 %1007
        %v1017 = vmul.f32 %v165, %v994
        %v1018 = vmul.f32 %v166, %v996
        %v1019 = vmul.f32 %v167, %v998
        %v1020 = vmul.f32 %v168, %v1000
        %v1021 = vmul.f32 %v169, %v1002
        %v1022 = vmul.f32 %v170, %v1004
        %v1023 = vmul.f32 %v171, %v1006
        %v1024 = vmul.f32 %v172, %v1008
        %vm1025 = vcmask 277768
        %v1026 = vsel %vm1025, %v1017, 0.0
        %v1027 = vsel %vm1025, %v1018, 0.0
        %v1028 = vadd.f32 %v1026, %v1027
        %v1029 = vsel %vm1025, %v1019, 0.0
        %v1030 = vadd.f32 %v1028, %v1029
        %v1031 = vsel %vm1025, %v1020, 0.0
        %v1032 = vadd.f32 %v1030, %v1031
        %v1033 = vsel %vm1025, %v1021, 0.0
        %v1034 = vadd.f32 %v1032, %v1033
        %v1035 = vsel %vm1025, %v1022, 0.0
        %v1036 = vadd.f32 %v1034, %v1035
        %v1037 = vsel %vm1025, %v1023, 0.0
        %v1038 = vadd.f32 %v1036, %v1037
        %v1039 = vsel %vm1025, %v1024, 0.0
        %v1040 = vadd.f32 %v1038, %v1039
        %v1041 = vrot.slane %v1040, 4
        %v1042 = vadd.f32 %v1040, %v1041
        %v1043 = vrot.slane %v1042, 2
        %v1044 = vadd.f32 %v1042, %v1043
        %v1045 = vrot.slane %v1044, 1
        %v1046 = vadd.f32 %v1044, %v1045
        %v1049 = vunpack.c.l.s4 1966171168
        %v1050 = vunpack.c.0.s8 %v1049
        %v1051 = vlaneseq
        %v1052 = vshrl.u32 %v1051, 7
        %v1053 = vsub.s32 %v1050, %v1052
        %v1054 = vrot.slane %v1046, %v1053
        %v1056 = vunpack.c.l.s4 1966171168
        %v1057 = vunpack.c.0.s8 %v1056
        %v1058 = vlaneseq
        %v1059 = vshrl.u32 %v1058, 7
        %v1060 = vsub.s32 %v1057, %v1059
        %v1061 = vrot.slane %v1054, %v1060
        %1062 = vrot.lane.b32.xlu0 %v1061, 95
        %v1063 = vpop.permute.xlu0 %1062
        %v1065 = vadd.f32 %v984, %v1063
        %vm1066 = vcmask 0
        %1067 = vst.msk [vmem:[#allocation2] sm:$0x1] %vm1066, %v1065
        %p1068 = scmp.eq.s32.totalorder %s15, 3
        // Predicated region
        $region37: #{tpu_custom_call.1} parent=31 // pred_check
          %p1069 = pneg %p1068
        $region38: #{tpu_custom_call.1} parent=31 // pred_check_branch
          %1071 = sbr.rel (%p1069) target = $region40
        $region39: #{tpu_custom_call.1} parent=31 // pred_region
          %v1072 = vld [vmem:[#allocation2] sm:$0x1]
          %v1073 = vmul.f32 %v1072, 0.005
          %1074 = vst.msk [vmem:[#allocation2] sm:$0x1] %vm1066, %v1073
        $region40: #{tpu_custom_call.1} parent=31 // pred_fallthru
          _
        // Predicated region
        $region41: #{tpu_custom_call.1} parent=31 // pred_check
          %p1075 = pneg %p96
        $region42: #{tpu_custom_call.1} parent=31 // pred_check_branch
          %1077 = sbr.rel (%p1075) target = $region44
        $region43: #{tpu_custom_call.1} parent=31 // pred_region
          %s1079 = ssub.s32 16, 16
          %1080 = vsyncadd [#allocation3], %s1079
          %s1082 = sshll.u32 [#allocation2], 4
          %s1083 = int_to_ptr.vmem [resolvable:$true] %s1082
          %1085 = dma.vmem_to_hbm [thread:$0]  %s1083, 16, %s3, [#allocation3]
        $region44: #{tpu_custom_call.1} parent=31 // pred_fallthru
          _
        // Predicated region
        $region45: #{tpu_custom_call.1} parent=31 // pred_check
          %p1086 = pneg %p96
        $region46: #{tpu_custom_call.1} parent=31 // pred_check_branch
          %1088 = sbr.rel (%p1086) target = $region48
        $region47: #{tpu_custom_call.1} parent=31 // pred_region
          %1089 = dma.done [#allocation3], 16
        $region48: #{tpu_custom_call.1} parent=31 // pred_fallthru
          _
      $region32: #{tpu_custom_call.1} parent=5 // pred_fallthru
        _
      %p1090 = scmp.le.s32.totalorder 2, %s10
      // Predicated region
      $region49: #{tpu_custom_call.1} parent=5 // pred_check
        %p1091 = pneg %p1090
      $region50: #{tpu_custom_call.1} parent=5 // pred_check_branch
        %1093 = sbr.rel (%p1091) target = $region52
      $region51: #{tpu_custom_call.1} parent=5 // pred_region
        %s1094 = ssub.s32 %s10, 2
      $region52: #{tpu_custom_call.1} parent=5 // pred_fallthru
        _
    $region6: #{tpu_custom_call.1} parent=1 // loop_footer
      %s14 = sadd.s32 1, %s10
    $region7: #{tpu_custom_call.1} parent=1 // loop_footer_branch
      %9 = sbr.rel target = $region3
    $region8: #{tpu_custom_call.1} parent=1 // loop_exit
      _
    %1095 = vsyncpa [#allocation3], 1
    %s1096 = scalar_lea.sflag [#allocation3], 1
    %1097 = vsyncpa %s1096, 1

</llo_original>
